<compile_context>
chip_gen: v7x
topology: tpu7x:2x2x1
jax: 0.10.0
libtpu: 0.0.40
codegen_flags: <defaults>
</compile_context>

<pallas_src>
import jax
import jax.numpy as jnp
import numpy as np
from jax.experimental import pallas as pl
from jax.experimental.pallas import tpu as pltpu

K5 = 5                    # fused receptive field (5x5)
C1, C2, C3 = 25, 5, 4     # conv1 (3x3), conv2 (5x5), conv3 (jpg 5x5) out-channels
COUT = C1 + C2 + C3       # 34


def _round_up(a, b):
    return (a + b - 1) // b * b


def _pick_tile_w(W, target=64):
    """Width tile.  A multiple of 64 makes Tw*COUT a multiple of 128 (lane-dense,
    unmasked stores).  v6e/v5e (128 MiB VMEM) can afford target=128; v7x (64 MiB)
    prefers 64.  Falls back to a single full-width tile for irregular widths."""
    if W % target == 0:
        return target
    return W


# --------------------------------------------------------------------------- #
# Kernel: one bf16 MXU matmul per (w_tile, batch) grid point.
# --------------------------------------------------------------------------- #
def _pre_layer_kernel(lhs_ref, r_ref, out_ref):
    # lhs_ref : (1, 1, H, K)     bf16 row-halo im2col tile (+ ones column)
    # r_ref   : (K, Tw*COUT)     bf16 banded Toeplitz filter bank (bias folded in)
    # out_ref : (1, H, Tw*COUT)  f32 lane-dense output tile
    out_ref[0] = jnp.dot(lhs_ref[0, 0], r_ref[...],
                         preferred_element_type=jnp.float32)


# --------------------------------------------------------------------------- #
# One-time init: fuse the 34 filters and build the banded RHS with numpy.
# --------------------------------------------------------------------------- #
def build_pre_layer_constants(params, W, tile_w=None):
    if tile_w is None:
        tile_w = _pick_tile_w(W)
    assert W % tile_w == 0, (W, tile_w)

    w3 = np.asarray(params["w3"], np.float32)
    w5 = np.asarray(params["w5"], np.float32)
    wj = np.asarray(params["wj"], np.float32)
    bias = np.concatenate([np.asarray(params["b3"], np.float32),
                           np.asarray(params["b5"], np.float32),
                           np.asarray(params["bj"], np.float32)])

    # Fused (COUT, 5, 5) bank; 3x3 filters embedded at the centre (pad 1 vs pad 2).
    wb = np.zeros((COUT, K5, K5), np.float32)
    wb[:C1, 1:4, 1:4] = w3[:, 0]
    wb[C1:C1 + C2] = w5[:, 0]
    wb[C1 + C2:] = wj[:, 0]

    Tw = tile_w
    Twp = Tw + 4
    k_raw = K5 * Twp + 1                      # + ones column (folded bias)
    k_pad = _round_up(k_raw, 8)

    # R[kh*Twp + (w+kw), w*COUT + co] = wb[co, kh, kw]  (band, translation invariant)
    r = np.zeros((k_pad, Tw * COUT), np.float32)
    for kh in range(K5):
        for kw in range(K5):
            for w in range(Tw):
                r[kh * Twp + w + kw, w * COUT:(w + 1) * COUT] = wb[:, kh, kw]
    r[K5 * Twp, :] = np.tile(bias, Tw)        # bias row, hit by the ones column

    return {"r": jnp.asarray(r, jnp.bfloat16), "tile_w": Tw, "k_pad": k_pad}


# --------------------------------------------------------------------------- #
# Forward wrapper.
# --------------------------------------------------------------------------- #
def pre_layer_forward(x_nchw, consts, *, channels_last=False):
    """x_nchw: (N, 1, H, W) float32 -> (N, 34, H, W) float32 (cat of the 3 convs)."""
    N, Cin, H, W = x_nchw.shape
    assert Cin == 1
    Tw, k_pad = consts["tile_w"], consts["k_pad"]
    assert W % Tw == 0
    n_wt = W // Tw
    Twp = Tw + 4
    Tc = Tw * COUT

    # Host-side (XLA) row-halo im2col: one pad=2 serves both the 3x3/pad=1 and
    # 5x5/pad=2 geometries; the 5 vertical shifts and per-tile column windows are
    # replicated here so the kernel does zero lane shuffling.
    x = x_nchw[:, 0].astype(jnp.float32)                                  # (N, H, W)
    xp = jnp.pad(x, ((0, 0), (2, 2), (2, 2)))                             # (N, H+4, W+4)
    shifts = jnp.stack([xp[:, kh:kh + H, :] for kh in range(K5)], axis=2)  # (N,H,5,W+4)
    col_idx = np.arange(n_wt)[:, None] * Tw + np.arange(Twp)[None, :]     # (n_wt, Twp)
    win = shifts[:, :, :, col_idx]                                        # (N,H,5,n_wt,Twp)
    win = jnp.transpose(win, (3, 0, 1, 2, 4)).reshape(n_wt, N, H, K5 * Twp)
    ones = jnp.ones((n_wt, N, H, 1), jnp.float32)                         # bias column
    zpad = jnp.zeros((n_wt, N, H, k_pad - K5 * Twp - 1), jnp.float32)
    lhs = jnp.concatenate([win, ones, zpad], axis=-1).astype(jnp.bfloat16)

    # VMEM budget: double-buffered lhs/out blocks + the (once-DMA'd) RHS.
    need = 2 * (H * k_pad * 2 + k_pad * Tc * 2 + H * Tc * 4) + (2 << 20)
    vmem_limit = int(need) if need > (32 << 20) else None

    out2d = pl.pallas_call(
        _pre_layer_kernel,
        out_shape=jax.ShapeDtypeStruct((N, H, W * COUT), jnp.float32),
        grid_spec=pltpu.PrefetchScalarGridSpec(
            num_scalar_prefetch=0,
            grid=(n_wt, N),                              # w-tile outer, batch inner
            in_specs=[
                pl.BlockSpec((1, 1, H, k_pad), lambda t, n: (t, n, 0, 0)),
                pl.BlockSpec((k_pad, Tc), lambda t, n: (0, 0)),   # constant -> DMA'd once
            ],
            out_specs=pl.BlockSpec((1, H, Tc), lambda t, n: (n, 0, t)),
        ),
        compiler_params=pltpu.CompilerParams(
            dimension_semantics=("parallel", "parallel"),
            vmem_limit_bytes=vmem_limit),
    )(lhs, consts["r"])

    out_nhwc = out2d.reshape(N, H, W, COUT)
    if channels_last:
        return out_nhwc
    # TODO(synk): fuse this NHWC->NCHW transpose into the consumer if the next
    # DFNet layer can take channels-last; the output is 34x the input, so this
    # full-tensor transpose roughly doubles the op's HBM traffic.
    return jnp.transpose(out_nhwc, (0, 3, 1, 2))                           # NCHW


# --------------------------------------------------------------------------- #
# Synthetic parameters + reference.
# --------------------------------------------------------------------------- #
def make_params(key):
    """Deterministic synthetic parameters matching the module's shapes.

    TODO(synk): the PyTorch module loads fixed DCT / SRM filter banks from .npy
    files; deterministic random filters of identical shapes are used instead.
    (Biases are zero-initialized in the module; small random biases are used
    here so the folded-bias path is actually exercised.)
    """
    k1, k2, k3, k4, k5, k6 = jax.random.split(key, 6)
    return {
        "w3": 0.1 * jax.random.normal(k1, (C1, 1, 3, 3), jnp.float32),   # SRM3_3-like
        "w5": 0.1 * jax.random.normal(k2, (C2, 1, 5, 5), jnp.float32),   # SRM5_5-like
        "wj": 0.1 * jax.random.normal(k3, (C3, 1, 5, 5), jnp.float32),   # DCT-like
        "b3": 0.01 * jax.random.normal(k4, (C1,), jnp.float32),
        "b5": 0.01 * jax.random.normal(k5, (C2,), jnp.float32),
        "bj": 0.01 * jax.random.normal(k6, (C3,), jnp.float32),
    }


def ref_forward(x_nchw, p):
    """Pure-JAX reference matching the kernel numerics (bf16 operands, f32 acc)."""
    def q(a):  # operand quantization used on the MXU
        return a.astype(jnp.bfloat16).astype(jnp.float32)

    x = q(x_nchw)

    def conv(w, b, pad):
        y = jax.lax.conv_general_dilated(
            x, q(w), window_strides=(1, 1),
            padding=((pad, pad), (pad, pad)),
            dimension_numbers=("NCHW", "OIHW", "NCHW"),
            precision=jax.lax.Precision.HIGHEST)
        return y + q(b).reshape(1, -1, 1, 1)

    x1 = conv(p["w3"], p["b3"], 1)
    x2 = conv(p["w5"], p["b5"], 2)
    x3 = conv(p["wj"], p["bj"], 2)
    return jnp.concatenate([x1, x2, x3], axis=1)


if __name__ == "__main__":
    N, H, W = 2, 16, 16                       # module input is single-channel
    key = jax.random.PRNGKey(0)
    kx, kp = jax.random.split(key)
    x = jax.random.normal(kx, (N, 1, H, W), jnp.float32)
    params = make_params(kp)

    consts = build_pre_layer_constants(params, W)          # one-time numpy init
    out = jax.block_until_ready(pre_layer_forward(x, consts))
    ref = jax.block_until_ready(ref_forward(x, params))

    assert out.shape == (N, COUT, H, W), out.shape
    max_err = float(jnp.max(jnp.abs(out - ref)))
    assert jnp.allclose(out, ref, atol=2e-3, rtol=2e-3), max_err
    print("KERNEL_OK")
</pallas_src>

<mosaic_0001>
module attributes {stable_mosaic.version = 11 : i64} {
  func.func @_pre_layer_kernel(%arg0: i32, %arg1: i32, %arg2: memref<1x1x16x104xbf16, #tpu.memory_space<vmem>>, %arg3: memref<104x544xbf16, #tpu.memory_space<vmem>>, %arg4: memref<1x16x544xf32, #tpu.memory_space<vmem>>) attributes {dimension_semantics = [#tpu.dimension_semantics<parallel>, #tpu.dimension_semantics<parallel>], iteration_bounds = array<i64: 1, 2>, scalar_prefetch = 0 : i64, scratch_operands = 0 : i64, tpu.core_type = #tpu.core_type<tc>, window_params = [{transform_indices = @transform_0, window_bounds = array<i64: 1, 1, 16, 104>}, {pipeline_mode = #tpu.pipeline_mode<synchronous>, transform_indices = @transform_1, window_bounds = array<i64: 104, 544>}, {transform_indices = @transform_2, window_bounds = array<i64: 1, 16, 544>}]} {
    %c0 = arith.constant 0 : index
    %c0_0 = arith.constant 0 : index
    %c0_1 = arith.constant 0 : index
    %c0_2 = arith.constant 0 : index
    %0 = vector.load %arg2[%c0, %c0_0, %c0_1, %c0_2] : memref<1x1x16x104xbf16, #tpu.memory_space<vmem>>, vector<1x1x16x104xbf16>
    %1 = vector.shape_cast %0 : vector<1x1x16x104xbf16> to vector<16x104xbf16>
    %c0_3 = arith.constant 0 : index
    %c0_4 = arith.constant 0 : index
    %2 = vector.load %arg3[%c0_3, %c0_4] : memref<104x544xbf16, #tpu.memory_space<vmem>>, vector<104x544xbf16>
    %cst = arith.constant dense<0.000000e+00> : vector<16x544xf32>
    %3 = tpu.matmul %1, %2, %cst {dimension_numbers = #tpu.dot_dimension_numbers<[1], [0], [0], [1], [0, 0, 1, 1], [], []>} : vector<16x104xbf16>, vector<104x544xbf16>, vector<16x544xf32> -> vector<16x544xf32>
    %c0_5 = arith.constant 0 : index
    %c0_6 = arith.constant 0 : index
    %c0_7 = arith.constant 0 : index
    %4 = vector.load %arg4[%c0_5, %c0_6, %c0_7] : memref<1x16x544xf32, #tpu.memory_space<vmem>>, vector<1x16x544xf32>
    %5 = vector.shape_cast %4 : vector<1x16x544xf32> to vector<16x544xf32>
    %6 = vector.shape_cast %3 : vector<16x544xf32> to vector<1x16x544xf32>
    tpu.vector_store %arg4[%c0_5, %c0_6, %c0_7], %6 {strides = array<i32>} : memref<1x16x544xf32, #tpu.memory_space<vmem>>, vector<1x16x544xf32>,
    return
  }
  func.func @transform_0(%arg0: i32, %arg1: i32) -> (i32, i32, i32, i32) {
    %c0_i32 = arith.constant 0 : i32
    %c0_i32_0 = arith.constant 0 : i32
    %c0_i32_1 = arith.constant 0 : i32
    return %arg0, %arg1, %c0_i32, %c0_i32_0 : i32, i32, i32, i32
  }
  func.func @transform_1(%arg0: i32, %arg1: i32) -> (i32, i32) {
    %c0_i32 = arith.constant 0 : i32
    %c0_i32_0 = arith.constant 0 : i32
    %c0_i32_1 = arith.constant 0 : i32
    return %c0_i32, %c0_i32_0 : i32, i32
  }
  func.func @transform_2(%arg0: i32, %arg1: i32) -> (i32, i32, i32) {
    %c0_i32 = arith.constant 0 : i32
    %c0_i32_0 = arith.constant 0 : i32
    return %arg1, %c0_i32, %arg0 : i32, i32, i32
  }
}

</mosaic_0001>

<llo_original>
// kernel: tpu_custom_call.1
$region0: #{tpu_custom_call.1}
  #allocation0 [shape = 'u32[]', space=smem, size = 0x4, offset = 0x4, fixed_abs, tag = 'smem constant byte address 0x4 - core index']
  #allocation1 [shape = 'u32[144,128]{1,0:T(1,128)}', space=vmem, size = 0x12000, scoped, tag = 'internal scratch']
  %s0 = inlined_call_operand.hbm [shape: bf16[1,2,16,104], index: 0, kind: input, shape index: {}]
  %s1 = inlined_call_operand.hbm [shape: bf16[104,544], index: 1, kind: input, shape index: {}]
  %s2 = inlined_call_operand.hbm [shape: f32[2,16,544], index: 2, kind: output, shape index: {}]
  %s3 = sld [smem:[#allocation0]]
  $region49: #{tpu_custom_call.1} parent=0
    _
  %s5 = ssub.s32 1, %s3
  %s6 = scalar_select 0, %s5, %s3
  $region1: #{tpu_custom_call.1} parent=0
    #allocation2 [shape = 'u8[8192]{0}', space=vmem, size = 0x2000, scoped, tag = 'input window, operand 0']
    #allocation3 [shape = 's32[2]{0}', space=sflag, size = 0x8, scoped, tag = 'scoped memory for tpu_custom_call.1']
    #allocation4 [shape = 's32[2]{0}', space=sflag, size = 0x8, scoped, tag = 'scoped memory for tpu_custom_call.1']
    #allocation5 [shape = 'u8[133120]{0}', space=vmem, size = 0x20800, scoped, tag = 'input window, operand 1, single buffered']
    #allocation6 [shape = 's32[1]{0}', space=sflag, size = 0x4, scoped, tag = 'scoped memory for tpu_custom_call.1']
    #allocation7 [shape = 'u8[81920]{0}', space=vmem, size = 0x14000, scoped, tag = 'output window, operand 0']
    %7 = vsyncpa [#allocation3], 0
    %s8 = scalar_lea.sflag [#allocation3], 1
    %9 = vsyncpa %s8, 0
    %10 = vsyncpa [#allocation6], 0
    %11 = vsyncpa [#allocation4], 0
    %s12 = scalar_lea.sflag [#allocation4], 1
    %13 = vsyncpa %s12, 0
    loop: start=0, step=1, limit=4
    $region2: #{tpu_custom_call.1} parent=1 // loop_pre_header
      _
    $region3: #{tpu_custom_call.1} parent=1 // loop_header
      %s15 = sphi 0, %s19
      %p16 = scmp.ge.s32.totalorder %s15, 4
      %s22 = sphi 0, %s34
      %s23 = sphi 0, %s30
      %s24 = sphi 0, %s22
      %s25 = sphi 0, %s23
      %s26 = sphi 0, %s24
      %s27 = sphi 0, %s25
      %s39 = sphi 0, %s41
      %s42 = sphi 0, %s39
      %s43 = sphi 0, %s42
      %s59 = sphi 0, %s43
      %s63 = sphi 0, %s63
      %s65 = sphi 0, %s63
      %s66 = sphi 0, %s65
      %s80 = sphi 0, %s66
      %s88 = sphi 0, %s90
      %s91 = sphi 0, %s88
      %s92 = sphi 0, %s91
      %s108 = sphi 0, %s92
    $region4: #{tpu_custom_call.1} parent=1 // loop_header_branch
      %18 = sbr.rel (%p16) target = $region8
    $region5: #{tpu_custom_call.1} parent=1 // loop_body
      %s20 = ssub.s32 %s15, 1
      %s21 = ssub.s32 %s15, 2
      %s28 = sadd.s32 1, %s23
      %p29 = scmp.ge.s32.totalorder %s28, 2
      %s30 = scalar_select %p29, 0, %s28
      %s31 = sadd.s32 1, %s22
      %s32 = scalar_select %p29, %s31, %s22
      %p33 = scmp.ge.s32.totalorder %s32, 1
      %s34 = scalar_select %p33, 0, %s32
      %s35 = ssub.s32 %s22, %s34
      %s36 = ssub.s32 %s23, %s30
      %s37 = sor.u32 %s35, %s36
      %p38 = scmp.eq.s32.totalorder %s37, 0
      %s40 = sadd.s32 %s39, 1
      %s41 = scalar_select %p38, %s39, %s40
      %p44 = pneg %p38
      %p45 = scmp.eq.s32.totalorder %s15, 1
      %p46 = por %p44, %p45
      %p47 = scmp.ne.s32.totalorder %s39, %s42
      %p48 = scmp.eq.s32.totalorder %s15, 0
      %p49 = por %p47, %p48
      %p50 = scmp.ne.s32.totalorder %s39, %s42
      %p51 = scmp.eq.s32.totalorder %s20, 1
      %p52 = por %p50, %p51
      %p53 = scmp.ne.s32.totalorder %s42, %s43
      %p54 = scmp.eq.s32.totalorder %s20, 0
      %p55 = por %p53, %p54
      %p56 = scmp.ne.s32.totalorder %s42, %s43
      %p57 = scmp.eq.s32.totalorder %s21, 1
      %p58 = por %p56, %p57
      %p60 = scmp.ne.s32.totalorder %s43, %s59
      %p61 = scmp.eq.s32.totalorder %s21, 0
      %p62 = por %p60, %p61
      %s64 = sadd.s32 %s63, 1
      %p67 = scmp.eq.s32.totalorder %s15, 1
      %p68 = scmp.ne.s32.totalorder %s63, %s65
      %p69 = scmp.eq.s32.totalorder %s15, 0
      %p70 = por %p68, %p69
      %p71 = scmp.ne.s32.totalorder %s63, %s65
      %p72 = scmp.eq.s32.totalorder %s20, 1
      %p73 = por %p71, %p72
      %p74 = scmp.ne.s32.totalorder %s65, %s66
      %p75 = scmp.eq.s32.totalorder %s20, 0
      %p76 = por %p74, %p75
      %p77 = scmp.ne.s32.totalorder %s65, %s66
      %p78 = scmp.eq.s32.totalorder %s21, 1
      %p79 = por %p77, %p78
      %p81 = scmp.ne.s32.totalorder %s66, %s80
      %p82 = scmp.eq.s32.totalorder %s21, 0
      %p83 = por %p81, %p82
      %s84 = ssub.s32 %s23, %s30
      %s85 = ssub.s32 %s22, %s34
      %s86 = sor.u32 %s84, %s85
      %p87 = scmp.eq.s32.totalorder %s86, 0
      %s89 = sadd.s32 %s88, 1
      %s90 = scalar_select %p87, %s88, %s89
      %p93 = pneg %p87
      %p94 = scmp.eq.s32.totalorder %s15, 1
      %p95 = por %p93, %p94
      %p96 = scmp.ne.s32.totalorder %s88, %s91
      %p97 = scmp.eq.s32.totalorder %s15, 0
      %p98 = por %p96, %p97
      %p99 = scmp.ne.s32.totalorder %s88, %s91
      %p100 = scmp.eq.s32.totalorder %s20, 1
      %p101 = por %p99, %p100
      %p102 = scmp.ne.s32.totalorder %s91, %s92
      %p103 = scmp.eq.s32.totalorder %s20, 0
      %p104 = por %p102, %p103
      %p105 = scmp.ne.s32.totalorder %s91, %s92
      %p106 = scmp.eq.s32.totalorder %s21, 1
      %p107 = por %p105, %p106
      %p109 = scmp.ne.s32.totalorder %s92, %s108
      %p110 = scmp.eq.s32.totalorder %s21, 0
      %p111 = por %p109, %p110
      %p112 = scmp.le.s32.totalorder 1, %s15
      %p113 = scmp.lt.s32.totalorder %s15, 3
      %p114 = pnand %p112, %p113
      %p115 = pneg %p114
      // Predicated region
      $region9: #{tpu_custom_call.1} parent=5 // pred_check
        _
      $region10: #{tpu_custom_call.1} parent=5 // pred_check_branch
        %117 = sbr.rel (%p114) target = $region12
      $region11: #{tpu_custom_call.1} parent=5 // pred_region
        %s118 = ssub.s32 %s15, 1
        // Predicated region
        $region13: #{tpu_custom_call.1} parent=11 // pred_check
          %p119 = pneg %p76
        $region14: #{tpu_custom_call.1} parent=11 // pred_check_branch
          %121 = sbr.rel (%p119) target = $region16
        $region15: #{tpu_custom_call.1} parent=11 // pred_region
          %s123 = ssub.s32 4160, 4160
          %124 = vsyncadd [#allocation6], %s123
          %s125 = sshll.u32 [#allocation5], 4
          %s126 = int_to_ptr.vmem [resolvable:$true] %s125
          %131 = dma.hbm_to_vmem [thread:$0]  %s1, 4160, %s126, [#allocation6], 320, 320, 20
        $region16: #{tpu_custom_call.1} parent=11 // pred_fallthru
          _
      $region12: #{tpu_custom_call.1} parent=5 // pred_fallthru
        _
      %p132 = scmp.lt.s32.totalorder %s15, 2
      // Predicated region
      $region17: #{tpu_custom_call.1} parent=5 // pred_check
        %p133 = pneg %p132
      $region18: #{tpu_custom_call.1} parent=5 // pred_check_branch
        %135 = sbr.rel (%p133) target = $region20
      $region19: #{tpu_custom_call.1} parent=5 // pred_region
        // Predicated region
        $region21: #{tpu_custom_call.1} parent=19 // pred_check
          %p136 = pneg %p49
        $region22: #{tpu_custom_call.1} parent=19 // pred_check_branch
          %138 = sbr.rel (%p136) target = $region24
        $region23: #{tpu_custom_call.1} parent=19 // pred_region
          %s139 = sand.u32 %s39, 1
          %s140 = scalar_lea.sflag [#allocation3], %s139
          %s141 = sand.u32 %s39, 1
          %s142 = smul.addr %s141, 8
          %s143 = scalar_lea.vmem [#allocation2], %s142
          %s145 = ssub.s32 128, 128
          %146 = vsyncadd %s140, %s145
          %s147 = smul.addr %s23, 2
          %s148 = smul.addr %s22, 4
          %s149 = sadd.s32 %s147, %s148
          %s150 = smul.addr %s149, 64
          %s151 = scalar_lea.hbm %s0, %s150
          %s152 = sshll.u32 %s143, 4
          %s153 = int_to_ptr.vmem [resolvable:$true] %s152
          %158 = dma.hbm_to_vmem [thread:$0]  %s151, 128, %s153, %s140, 64, 64, 4
        $region24: #{tpu_custom_call.1} parent=19 // pred_fallthru
          _
      $region20: #{tpu_custom_call.1} parent=5 // pred_fallthru
        _
      %p159 = scmp.le.s32.totalorder 1, %s15
      %p160 = scmp.lt.s32.totalorder %s15, 3
      %p161 = pnand %p159, %p160
      %p162 = pneg %p161
      // Predicated region
      $region25: #{tpu_custom_call.1} parent=5 // pred_check
        _
      $region26: #{tpu_custom_call.1} parent=5 // pred_check_branch
        %164 = sbr.rel (%p161) target = $region28
      $region27: #{tpu_custom_call.1} parent=5 // pred_region
        %s165 = ssub.s32 %s15, 1
        %s166 = sand.u32 %s42, 1
        %s167 = scalar_lea.sflag [#allocation3], %s166
        %s168 = sand.u32 %s42, 1
        %s169 = smul.addr %s168, 8
        %s170 = scalar_lea.vmem [#allocation2], %s169
        // Predicated region
        $region29: #{tpu_custom_call.1} parent=27 // pred_check
          %p171 = pneg %p55
        $region30: #{tpu_custom_call.1} parent=27 // pred_check_branch
          %173 = sbr.rel (%p171) target = $region32
        $region31: #{tpu_custom_call.1} parent=27 // pred_region
          %174 = dma.done %s167, 128
        $region32: #{tpu_custom_call.1} parent=27 // pred_fallthru
          _
        // Predicated region
        $region33: #{tpu_custom_call.1} parent=27 // pred_check
          %p175 = pneg %p76
        $region34: #{tpu_custom_call.1} parent=27 // pred_check_branch
          %177 = sbr.rel (%p175) target = $region36
        $region35: #{tpu_custom_call.1} parent=27 // pred_region
          %178 = dma.done [#allocation6], 4160
        $region36: #{tpu_custom_call.1} parent=27 // pred_fallthru
          _
        %s179 = sand.u32 %s42, 1
        %s180 = scalar_lea.sflag [#allocation3], %s179
        %s181 = sand.u32 %s42, 1
        %s182 = smul.addr %s181, 8
        %s183 = scalar_lea.vmem [#allocation2], %s182
        %p184 = pneg %p55
        %p185 = pneg %p52
        %p186 = pneg %p76
        %p187 = pneg %p73
        %p188 = pneg %p104
        %p189 = pneg %p101
        %s190 = sand.u32 %s91, 1
        %s191 = scalar_lea.sflag [#allocation4], %s190
        %s192 = sand.u32 %s91, 1
        %s193 = smul.addr %s192, 80
        %s194 = scalar_lea.vmem [#allocation7], %s193
        %s195 = smul.u32 5, %s24
        %v197 = vld [vmem:[%s170] sm:$0xf]
        %v198 = vld [vmem:[%s170 + $0x4] sm:$0xf]
        %v199 = vld [vmem:[#allocation5] sm:$0xff]
        %v200 = vld [vmem:[#allocation5 + $0x8] sm:$0xff]
        %v201 = vld [vmem:[#allocation5 + $0x10] sm:$0xf]
        %v202 = vld [vmem:[#allocation5 + $0x14] sm:$0xff]
        %v203 = vld [vmem:[#allocation5 + $0x1c] sm:$0xff]
        %v204 = vld [vmem:[#allocation5 + $0x24] sm:$0xf]
        %v205 = vld [vmem:[#allocation5 + $0x28] sm:$0xff]
        %v206 = vld [vmem:[#allocation5 + $0x30] sm:$0xff]
        %v207 = vld [vmem:[#allocation5 + $0x38] sm:$0xf]
        %v208 = vld [vmem:[#allocation5 + $0x3c] sm:$0xff]
        %v209 = vld [vmem:[#allocation5 + $0x44] sm:$0xff]
        %v210 = vld [vmem:[#allocation5 + $0x4c] sm:$0xf]
        %v211 = vld [vmem:[#allocation5 + $0x50] sm:$0xff]
        %v212 = vld [vmem:[#allocation5 + $0x58] sm:$0xff]
        %v213 = vld [vmem:[#allocation5 + $0x60] sm:$0xf]
        %v214 = vld [vmem:[#allocation5 + $0x64] sm:$0xff]
        %v215 = vld [vmem:[#allocation5 + $0x6c] sm:$0xff]
        %v216 = vld [vmem:[#allocation5 + $0x74] sm:$0xf]
        %v217 = vld [vmem:[#allocation5 + $0x78] sm:$0xff]
        %v218 = vld [vmem:[#allocation5 + $0x80] sm:$0xff]
        %v219 = vld [vmem:[#allocation5 + $0x88] sm:$0xf]
        %v220 = vld [vmem:[#allocation5 + $0x8c] sm:$0xff]
        %v221 = vld [vmem:[#allocation5 + $0x94] sm:$0xff]
        %v222 = vld [vmem:[#allocation5 + $0x9c] sm:$0xf]
        %v223 = vld [vmem:[#allocation5 + $0xa0] sm:$0xff]
        %v224 = vld [vmem:[#allocation5 + $0xa8] sm:$0xff]
        %v225 = vld [vmem:[#allocation5 + $0xb0] sm:$0xf]
        %v226 = vld [vmem:[#allocation5 + $0xb4] sm:$0xff]
        %v227 = vld [vmem:[#allocation5 + $0xbc] sm:$0xff]
        %v228 = vld [vmem:[#allocation5 + $0xc4] sm:$0xf]
        %v229 = vld [vmem:[#allocation5 + $0xc8] sm:$0xff]
        %v230 = vld [vmem:[#allocation5 + $0xd0] sm:$0xff]
        %v231 = vld [vmem:[#allocation5 + $0xd8] sm:$0xf]
        %v232 = vld [vmem:[#allocation5 + $0xdc] sm:$0xff]
        %v233 = vld [vmem:[#allocation5 + $0xe4] sm:$0xff]
        %v234 = vld [vmem:[#allocation5 + $0xec] sm:$0xf]
        %v235 = vld [vmem:[#allocation5 + $0xf0] sm:$0xff]
        %v236 = vld [vmem:[#allocation5 + $0xf8] sm:$0xff]
        %v237 = vld [vmem:[#allocation5 + $0x100] sm:$0xf]
        %v240 = vunpack.c.l.b16 %v197
        %v241 = vunpack.c.l.b16 %v198
        %v242 = vpack.c.b16 %v241, %v240
        %v282 = vunpack.c.l.b16 %v199
        %v283 = vunpack.c.h.b16 %v199
        %v284 = vunpack.c.l.b16 %v200
        %v285 = vunpack.c.h.b16 %v200
        %v286 = vunpack.c.l.b16 %v201
        %v287 = vunpack.c.l.b16 %v202
        %v288 = vunpack.c.h.b16 %v202
        %v289 = vunpack.c.l.b16 %v203
        %v290 = vunpack.c.h.b16 %v203
        %v291 = vunpack.c.l.b16 %v204
        %v292 = vunpack.c.l.b16 %v205
        %v293 = vunpack.c.h.b16 %v205
        %v294 = vunpack.c.l.b16 %v206
        %v295 = vunpack.c.h.b16 %v206
        %v296 = vunpack.c.l.b16 %v207
        %v297 = vunpack.c.l.b16 %v208
        %v298 = vunpack.c.h.b16 %v208
        %v299 = vunpack.c.l.b16 %v209
        %v300 = vunpack.c.h.b16 %v209
        %v301 = vunpack.c.l.b16 %v210
        %v302 = vunpack.c.l.b16 %v211
        %v303 = vunpack.c.h.b16 %v211
        %v304 = vunpack.c.l.b16 %v212
        %v305 = vunpack.c.h.b16 %v212
        %v306 = vunpack.c.l.b16 %v213
        %v307 = vunpack.c.l.b16 %v214
        %v308 = vunpack.c.h.b16 %v214
        %v309 = vunpack.c.l.b16 %v215
        %v310 = vunpack.c.h.b16 %v215
        %v311 = vunpack.c.l.b16 %v216
        %v312 = vunpack.c.l.b16 %v217
        %v313 = vunpack.c.h.b16 %v217
        %v314 = vunpack.c.l.b16 %v218
        %v315 = vunpack.c.h.b16 %v218
        %v316 = vunpack.c.l.b16 %v219
        %v317 = vunpack.c.l.b16 %v220
        %v318 = vunpack.c.h.b16 %v220
        %v319 = vunpack.c.l.b16 %v221
        %v320 = vunpack.c.h.b16 %v221
        %v321 = vunpack.c.l.b16 %v222
        %v322 = vunpack.c.l.b16 %v223
        %v323 = vunpack.c.h.b16 %v223
        %v324 = vunpack.c.l.b16 %v224
        %v325 = vunpack.c.h.b16 %v224
        %v326 = vunpack.c.l.b16 %v225
        %v327 = vunpack.c.l.b16 %v226
        %v328 = vunpack.c.h.b16 %v226
        %v329 = vunpack.c.l.b16 %v227
        %v330 = vunpack.c.h.b16 %v227
        %v331 = vunpack.c.l.b16 %v228
        %v332 = vunpack.c.l.b16 %v229
        %v333 = vunpack.c.h.b16 %v229
        %v334 = vunpack.c.l.b16 %v230
        %v335 = vunpack.c.h.b16 %v230
        %v336 = vunpack.c.l.b16 %v231
        %v337 = vunpack.c.l.b16 %v232
        %v338 = vunpack.c.h.b16 %v232
        %v339 = vunpack.c.l.b16 %v233
        %v340 = vunpack.c.h.b16 %v233
        %v341 = vunpack.c.l.b16 %v234
        %v342 = vunpack.c.l.b16 %v235
        %v343 = vunpack.c.h.b16 %v235
        %v344 = vunpack.c.l.b16 %v236
        %v345 = vunpack.c.h.b16 %v236
        %v346 = vunpack.c.l.b16 %v237
        %v347 = vpack.c.b16 %v287, %v282
        %v348 = vpack.c.b16 %v288, %v283
        %v349 = vpack.c.b16 %v289, %v284
        %v350 = vpack.c.b16 %v290, %v285
        %v351 = vpack.c.b16 %v291, %v286
        %v352 = vpack.c.b16 %v297, %v292
        %v353 = vpack.c.b16 %v298, %v293
        %v354 = vpack.c.b16 %v299, %v294
        %v355 = vpack.c.b16 %v300, %v295
        %v356 = vpack.c.b16 %v301, %v296
        %v357 = vpack.c.b16 %v307, %v302
        %v358 = vpack.c.b16 %v308, %v303
        %v359 = vpack.c.b16 %v309, %v304
        %v360 = vpack.c.b16 %v310, %v305
        %v361 = vpack.c.b16 %v311, %v306
        %v362 = vpack.c.b16 %v317, %v312
        %v363 = vpack.c.b16 %v318, %v313
        %v364 = vpack.c.b16 %v319, %v314
        %v365 = vpack.c.b16 %v320, %v315
        %v366 = vpack.c.b16 %v321, %v316
        %v367 = vpack.c.b16 %v327, %v322
        %v368 = vpack.c.b16 %v328, %v323
        %v369 = vpack.c.b16 %v329, %v324
        %v370 = vpack.c.b16 %v330, %v325
        %v371 = vpack.c.b16 %v331, %v326
        %v372 = vpack.c.b16 %v337, %v332
        %v373 = vpack.c.b16 %v338, %v333
        %v374 = vpack.c.b16 %v339, %v334
        %v375 = vpack.c.b16 %v340, %v335
        %v376 = vpack.c.b16 %v341, %v336
        %v377 = vpack.c.b16 %v342, %v342
        %v378 = vpack.c.b16 %v343, %v343
        %v379 = vpack.c.b16 %v344, %v344
        %v380 = vpack.c.b16 %v345, %v345
        %v381 = vpack.c.b16 %v346, %v346
        %vm412 = vcmask 850944
        %v414 = vsel %vm412, %v242, 0
        %vm416 = vcmask 1043456
        %v418 = vsel %vm416, %v377, 0
        %v421 = vsel %vm416, %v378, 0
        %v424 = vsel %vm416, %v379, 0
        %v427 = vsel %vm416, %v380, 0
        %v430 = vsel %vm416, %v381, 0
        %432 = vmatprep.subr.bf16.mxu0 %v348
        %433 = vmatpush1.bf16.msra.mxu0 %v347
        %434 = vmatprep.subr.bf16.mxu0 %v353
        %435 = vmatpush1.bf16.msra.mxu0 %v352
        %436 = vmatprep.subr.bf16.mxu0 %v358
        %437 = vmatpush1.bf16.msra.mxu0 %v357
        %438 = vmatprep.subr.bf16.mxu0 %v363
        %439 = vmatpush1.bf16.msra.mxu0 %v362
        %440 = vmatprep.subr.bf16.mxu0 %v368
        %441 = vmatpush1.bf16.msra.mxu0 %v367
        %442 = vmatprep.subr.bf16.mxu0 %v373
        %443 = vmatpush1.bf16.msra.mxu0 %v372
        %444 = vmatprep.subr.bf16.mxu0 %v421
        %445 = vmatpush1.bf16.msra.mxu0 %v418
        %446 = vmatprep.subr.bf16.mxu0 0
        %447 = vmatpush1.bf16.msra.mxu0 0
        %448 = vmatprep.subr.bf16.mxu0 0
        %449 = vmatpush1.bf16.msra.mxu0 0
        %450 = vmatprep.subr.bf16.mxu0 0
        %451 = vmatpush1.bf16.msra.mxu0 0
        %452 = vmatprep.subr.bf16.mxu0 0
        %453 = vmatpush1.bf16.msra.mxu0 0
        %454 = vmatprep.subr.bf16.mxu0 0
        %455 = vmatpush1.bf16.msra.mxu0 0
        %456 = vmatprep.subr.bf16.mxu0 0
        %457 = vmatpush1.bf16.msra.mxu0 0
        %458 = vmatprep.subr.bf16.mxu0 0
        %459 = vmatpush1.bf16.msra.mxu0 0
        %460 = vmatprep.subr.bf16.mxu0 0
        %461 = vmatpush1.bf16.msra.mxu0 0
        %462 = vmatprep.subr.bf16.mxu0 0
        %463 = vmatpush1.bf16.msra.mxu0 0
        %464 = vmatprep.mubr.bf16.mxu0 0
        %465 = vmatmul.mubr.bf16.gmra.mrb[0].mxu0 %v414
        %v466 = vpop.f32.mrb[0].mxu0
        %v467 = vadd.f32 0.0, %v466
        %v468 = vpop.f32.mrb[0].mxu0
        %v469 = vadd.f32 0.0, %v468
        %v470 = vpop.f32.mrb[0].mxu0
        %v471 = vadd.f32 0.0, %v470
        %v472 = vpop.f32.mrb[0].mxu0
        %v473 = vadd.f32 0.0, %v472
        %474 = vdwg.mxu0
        %475 = vmatprep.subr.bf16.mxu0 %v350
        %476 = vmatpush1.bf16.msra.mxu0 %v349
        %477 = vmatprep.subr.bf16.mxu0 %v355
        %478 = vmatpush1.bf16.msra.mxu0 %v354
        %479 = vmatprep.subr.bf16.mxu0 %v360
        %480 = vmatpush1.bf16.msra.mxu0 %v359
        %481 = vmatprep.subr.bf16.mxu0 %v365
        %482 = vmatpush1.bf16.msra.mxu0 %v364
        %483 = vmatprep.subr.bf16.mxu0 %v370
        %484 = vmatpush1.bf16.msra.mxu0 %v369
        %485 = vmatprep.subr.bf16.mxu0 %v375
        %486 = vmatpush1.bf16.msra.mxu0 %v374
        %487 = vmatprep.subr.bf16.mxu0 %v427
        %488 = vmatpush1.bf16.msra.mxu0 %v424
        %489 = vmatprep.subr.bf16.mxu0 0
        %490 = vmatpush1.bf16.msra.mxu0 0
        %491 = vmatprep.subr.bf16.mxu0 0
        %492 = vmatpush1.bf16.msra.mxu0 0
        %493 = vmatprep.subr.bf16.mxu0 0
        %494 = vmatpush1.bf16.msra.mxu0 0
        %495 = vmatprep.subr.bf16.mxu0 0
        %496 = vmatpush1.bf16.msra.mxu0 0
        %497 = vmatprep.subr.bf16.mxu0 0
        %498 = vmatpush1.bf16.msra.mxu0 0
        %499 = vmatprep.subr.bf16.mxu0 0
        %500 = vmatpush1.bf16.msra.mxu0 0
        %501 = vmatprep.subr.bf16.mxu0 0
        %502 = vmatpush1.bf16.msra.mxu0 0
        %503 = vmatprep.subr.bf16.mxu0 0
        %504 = vmatpush1.bf16.msra.mxu0 0
        %505 = vmatprep.subr.bf16.mxu0 0
        %506 = vmatpush1.bf16.msra.mxu0 0
        %507 = vmatprep.mubr.bf16.mxu0 0
        %508 = vmatmul.mubr.bf16.gmra.mrb[0].mxu0 %v414
        %v509 = vpop.f32.mrb[0].mxu0
        %v510 = vadd.f32 0.0, %v509
        %v511 = vpop.f32.mrb[0].mxu0
        %v512 = vadd.f32 0.0, %v511
        %v513 = vpop.f32.mrb[0].mxu0
        %v514 = vadd.f32 0.0, %v513
        %v515 = vpop.f32.mrb[0].mxu0
        %v516 = vadd.f32 0.0, %v515
        %517 = vdwg.mxu0
        %518 = vmatprep.subr.bf16.mxu0 0
        %519 = vmatpush1.bf16.msra.mxu0 %v351
        %520 = vmatprep.subr.bf16.mxu0 0
        %521 = vmatpush1.bf16.msra.mxu0 %v356
        %522 = vmatprep.subr.bf16.mxu0 0
        %523 = vmatpush1.bf16.msra.mxu0 %v361
        %524 = vmatprep.subr.bf16.mxu0 0
        %525 = vmatpush1.bf16.msra.mxu0 %v366
        %526 = vmatprep.subr.bf16.mxu0 0
        %527 = vmatpush1.bf16.msra.mxu0 %v371
        %528 = vmatprep.subr.bf16.mxu0 0
        %529 = vmatpush1.bf16.msra.mxu0 %v376
        %530 = vmatprep.subr.bf16.mxu0 0
        %531 = vmatpush1.bf16.msra.mxu0 %v430
        %532 = vmatprep.subr.bf16.mxu0 0
        %533 = vmatpush1.bf16.msra.mxu0 0
        %534 = vmatprep.subr.bf16.mxu0 0
        %535 = vmatpush1.bf16.msra.mxu0 0
        %536 = vmatprep.subr.bf16.mxu0 0
        %537 = vmatpush1.bf16.msra.mxu0 0
        %538 = vmatprep.subr.bf16.mxu0 0
        %539 = vmatpush1.bf16.msra.mxu0 0
        %540 = vmatprep.subr.bf16.mxu0 0
        %541 = vmatpush1.bf16.msra.mxu0 0
        %542 = vmatprep.subr.bf16.mxu0 0
        %543 = vmatpush1.bf16.msra.mxu0 0
        %544 = vmatprep.subr.bf16.mxu0 0
        %545 = vmatpush1.bf16.msra.mxu0 0
        %546 = vmatprep.subr.bf16.mxu0 0
        %547 = vmatpush1.bf16.msra.mxu0 0
        %548 = vmatprep.subr.bf16.mxu0 0
        %549 = vmatpush1.bf16.msra.mxu0 0
        %550 = vmatprep.mubr.bf16.mxu0 0
        %551 = vmatmul.mubr.bf16.gmra.mrb[0].mxu0 %v414
        %v552 = vpop.f32.mrb[0].mxu0
        %v553 = vadd.f32 0.0, %v552
        %v554 = vpop.f32.mrb[0].mxu0
        %v555 = vpop.f32.mrb[0].mxu0
        %v556 = vadd.f32 0.0, %v555
        %v557 = vpop.f32.mrb[0].mxu0
        %558 = vdwg.mxu0
        %559 = vst [vmem:[%s194] sm:$0xff] %v467
        %560 = vst [vmem:[%s194 + $0x8] sm:$0xff] %v469
        %561 = vst [vmem:[%s194 + $0x10] sm:$0xff] %v510
        %562 = vst [vmem:[%s194 + $0x18] sm:$0xff] %v512
        %vm563 = vcmask 261120
        %564 = vst.msk [vmem:[%s194 + $0x20] sm:$0xff] %vm563, %v553
        %565 = vst [vmem:[%s194 + $0x28] sm:$0xff] %v471
        %566 = vst [vmem:[%s194 + $0x30] sm:$0xff] %v473
        %567 = vst [vmem:[%s194 + $0x38] sm:$0xff] %v514
        %568 = vst [vmem:[%s194 + $0x40] sm:$0xff] %v516
        %569 = vst.msk [vmem:[%s194 + $0x48] sm:$0xff] %vm563, %v556
        %s570 = sand.u32 %s91, 1
        %s571 = scalar_lea.sflag [#allocation4], %s570
        %s572 = sand.u32 %s91, 1
        %s573 = smul.addr %s572, 80
        %s574 = scalar_lea.vmem [#allocation7], %s573
        // Predicated region
        $region37: #{tpu_custom_call.1} parent=27 // pred_check
          %p575 = pneg %p101
        $region38: #{tpu_custom_call.1} parent=27 // pred_check_branch
          %577 = sbr.rel (%p575) target = $region40
        $region39: #{tpu_custom_call.1} parent=27 // pred_region
          %s578 = smul.u32 5, %s24
          %s580 = ssub.s32 1280, 1280
          %581 = vsyncadd %s571, %s580
          %s582 = smul.addr %s25, 10
          %s583 = sadd.s32 %s578, %s582
          %s584 = smul.addr %s583, 128
          %s585 = scalar_lea.hbm %s2, %s584
          %s586 = sshll.u32 %s574, 4
          %s587 = int_to_ptr.vmem [resolvable:$true] %s586
          %592 = dma.vmem_to_hbm [thread:$0]  %s587, 1280, %s585, %s571, 640, 640, 40
        $region40: #{tpu_custom_call.1} parent=27 // pred_fallthru
          _
      $region28: #{tpu_custom_call.1} parent=5 // pred_fallthru
        _
      %p593 = scmp.le.s32.totalorder 2, %s15
      // Predicated region
      $region41: #{tpu_custom_call.1} parent=5 // pred_check
        %p594 = pneg %p593
      $region42: #{tpu_custom_call.1} parent=5 // pred_check_branch
        %596 = sbr.rel (%p594) target = $region44
      $region43: #{tpu_custom_call.1} parent=5 // pred_region
        %s597 = ssub.s32 %s15, 2
        // Predicated region
        $region45: #{tpu_custom_call.1} parent=43 // pred_check
          %p598 = pneg %p107
        $region46: #{tpu_custom_call.1} parent=43 // pred_check_branch
          %600 = sbr.rel (%p598) target = $region48
        $region47: #{tpu_custom_call.1} parent=43 // pred_region
          %s601 = sand.u32 %s92, 1
          %s602 = scalar_lea.sflag [#allocation4], %s601
          %s603 = sand.u32 %s92, 1
          %s604 = smul.addr %s603, 80
          %s605 = scalar_lea.vmem [#allocation7], %s604
          %606 = dma.done %s602, 1280
        $region48: #{tpu_custom_call.1} parent=43 // pred_fallthru
          _
      $region44: #{tpu_custom_call.1} parent=5 // pred_fallthru
        _
    $region6: #{tpu_custom_call.1} parent=1 // loop_footer
      %s19 = sadd.s32 1, %s15
    $region7: #{tpu_custom_call.1} parent=1 // loop_footer_branch
      %14 = sbr.rel target = $region3
    $region8: #{tpu_custom_call.1} parent=1 // loop_exit
      _
    %607 = vsyncpa [#allocation3], 1
    %s608 = scalar_lea.sflag [#allocation3], 1
    %609 = vsyncpa %s608, 1
    %610 = vsyncpa [#allocation6], 1
    %611 = vsyncpa [#allocation4], 1
    %s612 = scalar_lea.sflag [#allocation4], 1
    %613 = vsyncpa %s612, 1

</llo_original>
